<compile_context>
chip_gen: v6e
topology: v6e:2x2x1
jax: 0.10.0
libtpu: 0.0.40
codegen_flags: <defaults>
</compile_context>

<pallas_src>
import jax
import jax.numpy as jnp
from jax.experimental import pallas as pl
from jax.experimental.pallas import tpu as pltpu


def _round_up(x, m):
    return ((x + m - 1) // m) * m


def _pick_tile(n, cap, mult):
    """Largest t <= cap with t % mult == 0 and n % t == 0; fall back to n."""
    t = min(cap, n)
    t = (t // mult) * mult
    while t >= mult:
        if n % t == 0:
            return t
        t -= mult
    return n


def _sage_layer_kernel(adj_ref, h_ref, ws_ref, wn_ref, b_ref, o_ref, acc_ref):
    """One SAGEConv ("mean") layer, tiled over (dst rows, src rows)."""
    i = pl.program_id(0)
    k = pl.program_id(1)
    tm, tk = adj_ref.shape  # block shape of the adjacency tile

    @pl.when(k == 0)
    def _init():
        acc_ref[...] = jnp.zeros_like(acc_ref)

    # Neighbor aggregation: bf16 adjacency tile x bf16 resident-feature tile,
    # f32 accumulate on the MXU.  acc has shape (tm, F_in).
    src_off = pl.multiple_of(k * tk, tk)
    h_src = h_ref[pl.ds(src_off, tk), :]  # bf16 (tk, F_in), sliced from VMEM-resident h
    acc_ref[...] += jnp.dot(adj_ref[...], h_src,
                            preferred_element_type=jnp.float32)

    @pl.when(k == pl.num_programs(1) - 1)
    def _finalize():
        # Two small projections (no lane concatenate):
        #   out = h_dst @ W_self + h_neigh @ W_neigh + bias
        dst_off = pl.multiple_of(i * tm, tm)
        h_dst = h_ref[pl.ds(dst_off, tm), :].astype(jnp.float32)  # (tm, F_in)
        out = (jnp.dot(h_dst, ws_ref[...], preferred_element_type=jnp.float32)
               + jnp.dot(acc_ref[...], wn_ref[...],
                         preferred_element_type=jnp.float32)
               + b_ref[...])
        o_ref[...] = out.astype(o_ref.dtype)


def sage_conv(adj_bf16, h_bf16, w_self, w_neigh, bias_pad, *, tm=None, tk=None):
    """One SAGEConv layer via a tiled pallas_call.

    adj_bf16 : [N_dst, N_src] bf16 row-normalized adjacency (mean aggregator)
    h_bf16   : [N_src, F_in]  bf16 node features (src == dst node set here),
               made fully VMEM-resident inside the kernel
    w_self   : [F_in, F_out_pad] f32   (rows/cols zero-padded)
    w_neigh  : [F_in, F_out_pad] f32
    bias_pad : [1, F_out_pad] f32
    returns  : [N_dst, F_out_pad] f32  (stays lane-padded between layers)
    """
    n_dst, n_src = adj_bf16.shape
    n_src_h, f_in = h_bf16.shape
    f_out_pad = w_self.shape[1]
    assert n_src_h == n_src
    assert w_self.shape == (f_in, f_out_pad) and w_neigh.shape == (f_in, f_out_pad)
    assert f_out_pad % 128 == 0, "output must be lane-dense (pad F_out to 128)"
    assert h_bf16.dtype == jnp.bfloat16 and adj_bf16.dtype == jnp.bfloat16

    # Large tiles (HBM-bound kernel), but keep >= 2 dst-row tiles so the
    # "parallel" axis still shards across both v7x TensorCores.
    if tm is None:
        tm = _pick_tile(n_dst, min(512, max(8, n_dst // 2)), 8)
    if tk is None:
        tk = _pick_tile(n_src, 1024, 128)
    assert n_dst % tm == 0 and n_src % tk == 0, "pad N to a tile multiple"

    grid = (n_dst // tm, n_src // tk)

    cost = pl.CostEstimate(
        flops=int(2 * n_dst * n_src * f_in + 2 * 2 * n_dst * f_in * f_out_pad),
        transcendentals=0,
        bytes_accessed=int(adj_bf16.size * 2 + h_bf16.size * 2
                           + n_dst * f_out_pad * 4
                           + (w_self.size + w_neigh.size + bias_pad.size) * 4),
    )

    return pl.pallas_call(
        _sage_layer_kernel,
        out_shape=jax.ShapeDtypeStruct((n_dst, f_out_pad), jnp.float32),
        grid_spec=pltpu.PrefetchScalarGridSpec(
            num_scalar_prefetch=0,
            grid=grid,
            in_specs=[
                pl.BlockSpec((tm, tk), lambda i, k: (i, k)),           # A tile (dominant stream)
                pl.BlockSpec((n_src, f_in), lambda i, k: (0, 0)),      # resident bf16 h (DMA'd once)
                pl.BlockSpec((f_in, f_out_pad), lambda i, k: (0, 0)),  # W_self
                pl.BlockSpec((f_in, f_out_pad), lambda i, k: (0, 0)),  # W_neigh
                pl.BlockSpec((1, f_out_pad), lambda i, k: (0, 0)),     # bias
            ],
            out_specs=pl.BlockSpec((tm, f_out_pad), lambda i, k: (i, 0)),
            scratch_shapes=[pltpu.VMEM((tm, f_in), jnp.float32)],
        ),
        compiler_params=pltpu.CompilerParams(
            # dst-row axis parallel (v7x megacore), src/reduction axis arbitrary.
            dimension_semantics=("parallel", "arbitrary"),
            vmem_limit_bytes=64 * 1024 * 1024,
        ),
        cost_estimate=cost,
    )(adj_bf16, h_bf16, w_self, w_neigh, bias_pad)


def make_params(key, in_feats, hidden_size, out_feats, n_layers):
    """Deterministic SAGEConv params.

    Returns:
      packed : per-layer dict with zero-padded (w_self, w_neigh, bias) whose
               row count equals the (lane-padded) feature width entering that
               layer, so no inter-layer slicing is needed.
      raw    : per-layer (w_self, w_neigh, bias) at logical sizes, for the
               pure-JAX reference.
    """
    dims = []
    if n_layers == 1:
        dims.append((in_feats, out_feats))
    else:
        dims.append((in_feats, hidden_size))
        for _ in range(1, n_layers - 1):
            dims.append((hidden_size, hidden_size))
        dims.append((hidden_size, out_feats))

    packed, raw = [], []
    prev_width = in_feats  # feature width (possibly padded) entering the layer
    for (fi, fo) in dims:
        key, k1, k2, k3 = jax.random.split(key, 4)
        scale = 1.0 / jnp.sqrt(jnp.float32(fi))
        w_self = jax.random.uniform(k1, (fi, fo), jnp.float32, -scale, scale)
        w_neigh = jax.random.uniform(k2, (fi, fo), jnp.float32, -scale, scale)
        bias = jax.random.uniform(k3, (1, fo), jnp.float32, -scale, scale)

        fo_pad = _round_up(fo, 128)
        ws_pad = jnp.zeros((prev_width, fo_pad), jnp.float32).at[:fi, :fo].set(w_self)
        wn_pad = jnp.zeros((prev_width, fo_pad), jnp.float32).at[:fi, :fo].set(w_neigh)
        b_pad = jnp.zeros((1, fo_pad), jnp.float32).at[:, :fo].set(bias)

        packed.append(dict(ws=ws_pad, wn=wn_pad, b=b_pad,
                           f_out=fo, f_out_pad=fo_pad))
        raw.append((w_self, w_neigh, bias))
        prev_width = fo_pad
    return packed, raw


def graphsage_forward(adj_norms_bf16, inputs, packed_params):
    """GraphSAGE.forward: iterate SAGEConv layers over (graphs, h).

    h stays lane-padded between layers (padded weight rows are zero); only the
    final output is sliced to the logical out_feats.
    """
    h = inputs.astype(jnp.float32)
    for adj_bf16, p in zip(adj_norms_bf16, packed_params):
        h_bf16 = h.astype(jnp.bfloat16)  # single wrapper-side cast per layer
        h = sage_conv(adj_bf16, h_bf16, p["ws"], p["wn"], p["b"])
    return h[:, :packed_params[-1]["f_out"]]


if __name__ == "__main__":
    # Small synthetic setup consistent with the module.
    N = 256            # nodes (same src/dst set for every block)
    in_feats = 64
    hidden_size = 64
    out_feats = 32
    n_layers = 2

    key = jax.random.PRNGKey(0)
    key, kx, ka0, ka1 = jax.random.split(key, 4)

    x = jax.random.normal(kx, (N, in_feats), jnp.float32)

    def make_adj(k):
        a_raw = (jax.random.uniform(k, (N, N)) < 0.1).astype(jnp.float32)
        deg = jnp.maximum(a_raw.sum(axis=1, keepdims=True), 1.0)
        return (a_raw / deg).astype(jnp.bfloat16)   # mean aggregator, bf16 stream

    adj_norms = [make_adj(ka0), make_adj(ka1)]

    packed_params, raw_params = make_params(key, in_feats, hidden_size,
                                            out_feats, n_layers)

    out = graphsage_forward(adj_norms, x, packed_params)
    out = jax.block_until_ready(out)
    assert out.shape == (N, out_feats)

    # Pure-JAX reference (mirrors the kernel's bf16 feature quantization path).
    h_ref = x
    for adj_bf16, (ws, wn, b) in zip(adj_norms, raw_params):
        hb = h_ref.astype(jnp.bfloat16)
        h_neigh = jnp.dot(adj_bf16, hb, preferred_element_type=jnp.float32)
        h_ref = (jnp.dot(hb.astype(jnp.float32), ws,
                         precision=jax.lax.Precision.HIGHEST)
                 + jnp.dot(h_neigh, wn, precision=jax.lax.Precision.HIGHEST)
                 + b)

    assert jnp.allclose(out, h_ref, atol=1e-2, rtol=1e-2), (
        float(jnp.max(jnp.abs(out - h_ref))))

    print("KERNEL_OK")
</pallas_src>

<mosaic_0001>
module attributes {stable_mosaic.version = 11 : i64} {
  func.func @_sage_layer_kernel(%arg0: i32, %arg1: i32, %arg2: memref<128x256xbf16, #tpu.memory_space<vmem>>, %arg3: memref<256x64xbf16, #tpu.memory_space<vmem>>, %arg4: memref<64x128xf32, #tpu.memory_space<vmem>>, %arg5: memref<64x128xf32, #tpu.memory_space<vmem>>, %arg6: memref<1x128xf32, #tpu.memory_space<vmem>>, %arg7: memref<128x128xf32, #tpu.memory_space<vmem>>, %arg8: memref<128x64xf32, #tpu.memory_space<vmem>>) attributes {dimension_semantics = [#tpu.dimension_semantics<parallel>, #tpu.dimension_semantics<arbitrary>], iteration_bounds = array<i64: 2, 1>, scalar_prefetch = 0 : i64, scratch_operands = 1 : i64, tpu.core_type = #tpu.core_type<tc>, window_params = [{transform_indices = @transform_0, window_bounds = array<i64: 128, 256>}, {pipeline_mode = #tpu.pipeline_mode<synchronous>, transform_indices = @transform_1, window_bounds = array<i64: 256, 64>}, {pipeline_mode = #tpu.pipeline_mode<synchronous>, transform_indices = @transform_2, window_bounds = array<i64: 64, 128>}, {pipeline_mode = #tpu.pipeline_mode<synchronous>, transform_indices = @transform_3, window_bounds = array<i64: 64, 128>}, {pipeline_mode = #tpu.pipeline_mode<synchronous>, transform_indices = @transform_4, window_bounds = array<i64: 1, 128>}, {transform_indices = @transform_5, window_bounds = array<i64: 128, 128>}]} {
    %c0_i32 = arith.constant 0 : i32
    %0 = arith.cmpi eq, %arg1, %c0_i32 : i32
    %1 = arith.extui %0 : i1 to i32
    %c0_i32_0 = arith.constant 0 : i32
    %2 = arith.cmpi ne, %1, %c0_i32_0 : i32
    scf.if %2 {
      %cst_9 = arith.constant 0.000000e+00 : f32
      %15 = vector.broadcast %cst_9 : f32 to vector<128x64xf32>
      %c0_10 = arith.constant 0 : index
      %c0_11 = arith.constant 0 : index
      %16 = vector.load %arg8[%c0_10, %c0_11] : memref<128x64xf32, #tpu.memory_space<vmem>>, vector<128x64xf32>
      tpu.vector_store %arg8[%c0_10, %c0_11], %15 {strides = array<i32>} : memref<128x64xf32, #tpu.memory_space<vmem>>, vector<128x64xf32>,
    } else {
    }
    %c256_i32 = arith.constant 256 : i32
    %3 = arith.muli %arg1, %c256_i32 : i32
    %4 = tpu.assume_multiple %3, 256 : i32
    %5 = arith.index_cast %4 : i32 to index
    %c0 = arith.constant 0 : index
    %6 = vector.load %arg3[%5, %c0] : memref<256x64xbf16, #tpu.memory_space<vmem>>, vector<256x64xbf16>
    %c0_1 = arith.constant 0 : index
    %c0_2 = arith.constant 0 : index
    %7 = vector.load %arg8[%c0_1, %c0_2] : memref<128x64xf32, #tpu.memory_space<vmem>>, vector<128x64xf32>
    %c0_3 = arith.constant 0 : index
    %c0_4 = arith.constant 0 : index
    %8 = vector.load %arg2[%c0_3, %c0_4] : memref<128x256xbf16, #tpu.memory_space<vmem>>, vector<128x256xbf16>
    %cst = arith.constant dense<0.000000e+00> : vector<128x64xf32>
    %9 = tpu.matmul %8, %6, %cst {dimension_numbers = #tpu.dot_dimension_numbers<[1], [0], [0], [1], [0, 0, 1, 1], [], []>} : vector<128x256xbf16>, vector<256x64xbf16>, vector<128x64xf32> -> vector<128x64xf32>
    %10 = arith.addf %7, %9 : vector<128x64xf32>
    %c0_5 = arith.constant 0 : index
    %c0_6 = arith.constant 0 : index
    %11 = vector.load %arg8[%c0_5, %c0_6] : memref<128x64xf32, #tpu.memory_space<vmem>>, vector<128x64xf32>
    tpu.vector_store %arg8[%c0_5, %c0_6], %10 {strides = array<i32>} : memref<128x64xf32, #tpu.memory_space<vmem>>, vector<128x64xf32>,
    %c0_i32_7 = arith.constant 0 : i32
    %12 = arith.cmpi eq, %arg1, %c0_i32_7 : i32
    %13 = arith.extui %12 : i1 to i32
    %c0_i32_8 = arith.constant 0 : i32
    %14 = arith.cmpi ne, %13, %c0_i32_8 : i32
    scf.if %14 {
      %c128_i32 = arith.constant 128 : i32
      %15 = arith.muli %arg0, %c128_i32 : i32
      %16 = tpu.assume_multiple %15, 128 : i32
      %17 = arith.index_cast %16 : i32 to index
      %c0_9 = arith.constant 0 : index
      %18 = vector.load %arg3[%17, %c0_9] : memref<256x64xbf16, #tpu.memory_space<vmem>>, vector<128x64xbf16>
      %19 = arith.extf %18 : vector<128x64xbf16> to vector<128x64xf32>
      %c0_10 = arith.constant 0 : index
      %c0_11 = arith.constant 0 : index
      %20 = vector.load %arg4[%c0_10, %c0_11] : memref<64x128xf32, #tpu.memory_space<vmem>>, vector<64x128xf32>
      %cst_12 = arith.constant dense<0.000000e+00> : vector<128x128xf32>
      %21 = tpu.matmul %19, %20, %cst_12 {dimension_numbers = #tpu.dot_dimension_numbers<[1], [0], [0], [1], [0, 0, 1, 1], [], []>} : vector<128x64xf32>, vector<64x128xf32>, vector<128x128xf32> -> vector<128x128xf32>
      %c0_13 = arith.constant 0 : index
      %c0_14 = arith.constant 0 : index
      %22 = vector.load %arg8[%c0_13, %c0_14] : memref<128x64xf32, #tpu.memory_space<vmem>>, vector<128x64xf32>
      %c0_15 = arith.constant 0 : index
      %c0_16 = arith.constant 0 : index
      %23 = vector.load %arg5[%c0_15, %c0_16] : memref<64x128xf32, #tpu.memory_space<vmem>>, vector<64x128xf32>
      %cst_17 = arith.constant dense<0.000000e+00> : vector<128x128xf32>
      %24 = tpu.matmul %22, %23, %cst_17 {dimension_numbers = #tpu.dot_dimension_numbers<[1], [0], [0], [1], [0, 0, 1, 1], [], []>} : vector<128x64xf32>, vector<64x128xf32>, vector<128x128xf32> -> vector<128x128xf32>
      %25 = arith.addf %21, %24 : vector<128x128xf32>
      %c0_18 = arith.constant 0 : index
      %c0_19 = arith.constant 0 : index
      %26 = vector.load %arg6[%c0_18, %c0_19] : memref<1x128xf32, #tpu.memory_space<vmem>>, vector<1x128xf32>
      %27 = vector.broadcast %26 : vector<1x128xf32> to vector<128x128xf32>
      %28 = arith.addf %25, %27 : vector<128x128xf32>
      %c0_20 = arith.constant 0 : index
      %c0_21 = arith.constant 0 : index
      %29 = vector.load %arg7[%c0_20, %c0_21] : memref<128x128xf32, #tpu.memory_space<vmem>>, vector<128x128xf32>
      tpu.vector_store %arg7[%c0_20, %c0_21], %28 {strides = array<i32>} : memref<128x128xf32, #tpu.memory_space<vmem>>, vector<128x128xf32>,
    } else {
    }
    return
  }
  func.func @transform_0(%arg0: i32, %arg1: i32) -> (i32, i32) {
    %c0_i32 = arith.constant 0 : i32
    return %arg0, %arg1 : i32, i32
  }
  func.func @transform_1(%arg0: i32, %arg1: i32) -> (i32, i32) {
    %c0_i32 = arith.constant 0 : i32
    %c0_i32_0 = arith.constant 0 : i32
    %c0_i32_1 = arith.constant 0 : i32
    return %c0_i32, %c0_i32_0 : i32, i32
  }
  func.func @transform_2(%arg0: i32, %arg1: i32) -> (i32, i32) {
    %c0_i32 = arith.constant 0 : i32
    %c0_i32_0 = arith.constant 0 : i32
    %c0_i32_1 = arith.constant 0 : i32
    return %c0_i32, %c0_i32_0 : i32, i32
  }
  func.func @transform_3(%arg0: i32, %arg1: i32) -> (i32, i32) {
    %c0_i32 = arith.constant 0 : i32
    %c0_i32_0 = arith.constant 0 : i32
    %c0_i32_1 = arith.constant 0 : i32
    return %c0_i32, %c0_i32_0 : i32, i32
  }
  func.func @transform_4(%arg0: i32, %arg1: i32) -> (i32, i32) {
    %c0_i32 = arith.constant 0 : i32
    %c0_i32_0 = arith.constant 0 : i32
    %c0_i32_1 = arith.constant 0 : i32
    return %c0_i32, %c0_i32_0 : i32, i32
  }
  func.func @transform_5(%arg0: i32, %arg1: i32) -> (i32, i32) {
    %c0_i32 = arith.constant 0 : i32
    %c0_i32_0 = arith.constant 0 : i32
    return %arg0, %c0_i32 : i32, i32
  }
}

</mosaic_0001>

<llo_original>
// kernel: tpu_custom_call.1
$region0: #{tpu_custom_call.1}
  #allocation0 [shape = 'u32[]', space=smem, size = 0x4, offset = 0x4, fixed_abs, tag = 'smem constant byte address 0x4 - core index']
  #allocation1 [shape = 'u32[144,128]{1,0:T(1,128)}', space=vmem, size = 0x12000, scoped, tag = 'internal scratch']
  #allocation2 [shape = 'f32[128,64]{1,0:T(8,128)}', space=vmem, size = 0x10000, scoped, tag = 'scratch operand']
  %s0 = inlined_call_operand.hbm [shape: bf16[256,256], index: 0, kind: input, shape index: {}]
  %s1 = inlined_call_operand.vmem [shape: bf16[256,64], index: 1, kind: input, shape index: {}]
  %s2 = inlined_call_operand.vmem [shape: f32[64,128], index: 2, kind: input, shape index: {}]
  %s3 = inlined_call_operand.vmem [shape: f32[64,128], index: 3, kind: input, shape index: {}]
  %s4 = inlined_call_operand.vmem [shape: f32[1,128], index: 4, kind: input, shape index: {}]
  %s5 = inlined_call_operand.hbm [shape: f32[256,128], index: 5, kind: output, shape index: {}]
  %s6 = sld [smem:[#allocation0]]
  $region65: #{tpu_custom_call.1} parent=0
    _
  %s8 = ssub.s32 1, %s6
  %s9 = scalar_select 0, %s8, %s6
  $region1: #{tpu_custom_call.1} parent=0
    #allocation3 [shape = 'u8[131072]{0}', space=vmem, size = 0x20000, scoped, tag = 'input window, operand 0']
    #allocation4 [shape = 's32[2]{0}', space=sflag, size = 0x8, scoped, tag = 'scoped memory for tpu_custom_call.1']
    #allocation5 [shape = 's32[2]{0}', space=sflag, size = 0x8, scoped, tag = 'scoped memory for tpu_custom_call.1']
    #allocation6 [shape = 'u8[131072]{0}', space=vmem, size = 0x20000, scoped, tag = 'output window, operand 0']
    %10 = vsyncpa [#allocation4], 0
    %s11 = scalar_lea.sflag [#allocation4], 1
    %12 = vsyncpa %s11, 0
    %13 = vsyncpa [#allocation5], 0
    %s14 = scalar_lea.sflag [#allocation5], 1
    %15 = vsyncpa %s14, 0
    loop: start=0, step=1, limit=4
    $region2: #{tpu_custom_call.1} parent=1 // loop_pre_header
      _
    $region3: #{tpu_custom_call.1} parent=1 // loop_header
      %s17 = sphi 0, %s21
      %p18 = scmp.ge.s32.totalorder %s17, 4
      %s24 = sphi 0, %s36
      %s25 = sphi 0, %s32
      %s26 = sphi 0, %s24
      %s27 = sphi 0, %s25
      %s28 = sphi 0, %s26
      %s29 = sphi 0, %s27
      %s41 = sphi 0, %s43
      %s44 = sphi 0, %s41
      %s45 = sphi 0, %s44
      %s61 = sphi 0, %s45
      %s65 = sphi 0, %s65
      %s67 = sphi 0, %s65
      %s68 = sphi 0, %s67
      %s82 = sphi 0, %s68
      %s86 = sphi 0, %s86
      %s88 = sphi 0, %s86
      %s89 = sphi 0, %s88
      %s103 = sphi 0, %s89
      %s107 = sphi 0, %s107
      %s109 = sphi 0, %s107
      %s110 = sphi 0, %s109
      %s124 = sphi 0, %s110
      %s128 = sphi 0, %s128
      %s130 = sphi 0, %s128
      %s131 = sphi 0, %s130
      %s145 = sphi 0, %s131
      %s151 = sphi 0, %s153
      %s154 = sphi 0, %s151
      %s155 = sphi 0, %s154
      %s171 = sphi 0, %s155
    $region4: #{tpu_custom_call.1} parent=1 // loop_header_branch
      %20 = sbr.rel (%p18) target = $region8
    $region5: #{tpu_custom_call.1} parent=1 // loop_body
      %s22 = ssub.s32 %s17, 1
      %s23 = ssub.s32 %s17, 2
      %s30 = sadd.s32 1, %s25
      %p31 = scmp.ge.s32.totalorder %s30, 1
      %s32 = scalar_select %p31, 0, %s30
      %s33 = sadd.s32 1, %s24
      %s34 = scalar_select %p31, %s33, %s24
      %p35 = scmp.ge.s32.totalorder %s34, 2
      %s36 = scalar_select %p35, 0, %s34
      %s37 = ssub.s32 %s24, %s36
      %s38 = ssub.s32 %s25, %s32
      %s39 = sor.u32 %s37, %s38
      %p40 = scmp.eq.s32.totalorder %s39, 0
      %s42 = sadd.s32 %s41, 1
      %s43 = scalar_select %p40, %s41, %s42
      %p46 = pneg %p40
      %p47 = scmp.eq.s32.totalorder %s17, 1
      %p48 = por %p46, %p47
      %p49 = scmp.ne.s32.totalorder %s41, %s44
      %p50 = scmp.eq.s32.totalorder %s17, 0
      %p51 = por %p49, %p50
      %p52 = scmp.ne.s32.totalorder %s41, %s44
      %p53 = scmp.eq.s32.totalorder %s22, 1
      %p54 = por %p52, %p53
      %p55 = scmp.ne.s32.totalorder %s44, %s45
      %p56 = scmp.eq.s32.totalorder %s22, 0
      %p57 = por %p55, %p56
      %p58 = scmp.ne.s32.totalorder %s44, %s45
      %p59 = scmp.eq.s32.totalorder %s23, 1
      %p60 = por %p58, %p59
      %p62 = scmp.ne.s32.totalorder %s45, %s61
      %p63 = scmp.eq.s32.totalorder %s23, 0
      %p64 = por %p62, %p63
      %s66 = sadd.s32 %s65, 1
      %p69 = scmp.eq.s32.totalorder %s17, 1
      %p70 = scmp.ne.s32.totalorder %s65, %s67
      %p71 = scmp.eq.s32.totalorder %s17, 0
      %p72 = por %p70, %p71
      %p73 = scmp.ne.s32.totalorder %s65, %s67
      %p74 = scmp.eq.s32.totalorder %s22, 1
      %p75 = por %p73, %p74
      %p76 = scmp.ne.s32.totalorder %s67, %s68
      %p77 = scmp.eq.s32.totalorder %s22, 0
      %p78 = por %p76, %p77
      %p79 = scmp.ne.s32.totalorder %s67, %s68
      %p80 = scmp.eq.s32.totalorder %s23, 1
      %p81 = por %p79, %p80
      %p83 = scmp.ne.s32.totalorder %s68, %s82
      %p84 = scmp.eq.s32.totalorder %s23, 0
      %p85 = por %p83, %p84
      %s87 = sadd.s32 %s86, 1
      %p90 = scmp.eq.s32.totalorder %s17, 1
      %p91 = scmp.ne.s32.totalorder %s86, %s88
      %p92 = scmp.eq.s32.totalorder %s17, 0
      %p93 = por %p91, %p92
      %p94 = scmp.ne.s32.totalorder %s86, %s88
      %p95 = scmp.eq.s32.totalorder %s22, 1
      %p96 = por %p94, %p95
      %p97 = scmp.ne.s32.totalorder %s88, %s89
      %p98 = scmp.eq.s32.totalorder %s22, 0
      %p99 = por %p97, %p98
      %p100 = scmp.ne.s32.totalorder %s88, %s89
      %p101 = scmp.eq.s32.totalorder %s23, 1
      %p102 = por %p100, %p101
      %p104 = scmp.ne.s32.totalorder %s89, %s103
      %p105 = scmp.eq.s32.totalorder %s23, 0
      %p106 = por %p104, %p105
      %s108 = sadd.s32 %s107, 1
      %p111 = scmp.eq.s32.totalorder %s17, 1
      %p112 = scmp.ne.s32.totalorder %s107, %s109
      %p113 = scmp.eq.s32.totalorder %s17, 0
      %p114 = por %p112, %p113
      %p115 = scmp.ne.s32.totalorder %s107, %s109
      %p116 = scmp.eq.s32.totalorder %s22, 1
      %p117 = por %p115, %p116
      %p118 = scmp.ne.s32.totalorder %s109, %s110
      %p119 = scmp.eq.s32.totalorder %s22, 0
      %p120 = por %p118, %p119
      %p121 = scmp.ne.s32.totalorder %s109, %s110
      %p122 = scmp.eq.s32.totalorder %s23, 1
      %p123 = por %p121, %p122
      %p125 = scmp.ne.s32.totalorder %s110, %s124
      %p126 = scmp.eq.s32.totalorder %s23, 0
      %p127 = por %p125, %p126
      %s129 = sadd.s32 %s128, 1
      %p132 = scmp.eq.s32.totalorder %s17, 1
      %p133 = scmp.ne.s32.totalorder %s128, %s130
      %p134 = scmp.eq.s32.totalorder %s17, 0
      %p135 = por %p133, %p134
      %p136 = scmp.ne.s32.totalorder %s128, %s130
      %p137 = scmp.eq.s32.totalorder %s22, 1
      %p138 = por %p136, %p137
      %p139 = scmp.ne.s32.totalorder %s130, %s131
      %p140 = scmp.eq.s32.totalorder %s22, 0
      %p141 = por %p139, %p140
      %p142 = scmp.ne.s32.totalorder %s130, %s131
      %p143 = scmp.eq.s32.totalorder %s23, 1
      %p144 = por %p142, %p143
      %p146 = scmp.ne.s32.totalorder %s131, %s145
      %p147 = scmp.eq.s32.totalorder %s23, 0
      %p148 = por %p146, %p147
      %s149 = ssub.s32 %s24, %s36
      %p150 = scmp.eq.s32.totalorder %s149, 0
      %s152 = sadd.s32 %s151, 1
      %s153 = scalar_select %p150, %s151, %s152
      %p156 = pneg %p150
      %p157 = scmp.eq.s32.totalorder %s17, 1
      %p158 = por %p156, %p157
      %p159 = scmp.ne.s32.totalorder %s151, %s154
      %p160 = scmp.eq.s32.totalorder %s17, 0
      %p161 = por %p159, %p160
      %p162 = scmp.ne.s32.totalorder %s151, %s154
      %p163 = scmp.eq.s32.totalorder %s22, 1
      %p164 = por %p162, %p163
      %p165 = scmp.ne.s32.totalorder %s154, %s155
      %p166 = scmp.eq.s32.totalorder %s22, 0
      %p167 = por %p165, %p166
      %p168 = scmp.ne.s32.totalorder %s154, %s155
      %p169 = scmp.eq.s32.totalorder %s23, 1
      %p170 = por %p168, %p169
      %p172 = scmp.ne.s32.totalorder %s155, %s171
      %p173 = scmp.eq.s32.totalorder %s23, 0
      %p174 = por %p172, %p173
      %p175 = scmp.le.s32.totalorder 1, %s17
      %p176 = scmp.lt.s32.totalorder %s17, 3
      %p177 = pnand %p175, %p176
      %p178 = pneg %p177
      // Predicated region
      $region9: #{tpu_custom_call.1} parent=5 // pred_check
        _
      $region10: #{tpu_custom_call.1} parent=5 // pred_check_branch
        %180 = sbr.rel (%p177) target = $region12
      $region11: #{tpu_custom_call.1} parent=5 // pred_region
        %s181 = ssub.s32 %s17, 1
        // Predicated region
        $region13: #{tpu_custom_call.1} parent=11 // pred_check
          %p182 = pneg %p78
        $region14: #{tpu_custom_call.1} parent=11 // pred_check_branch
          %184 = sbr.rel (%p182) target = $region16
        $region15: #{tpu_custom_call.1} parent=11 // pred_region
          _
        $region16: #{tpu_custom_call.1} parent=11 // pred_fallthru
          _
        // Predicated region
        $region17: #{tpu_custom_call.1} parent=11 // pred_check
          %p185 = pneg %p99
        $region18: #{tpu_custom_call.1} parent=11 // pred_check_branch
          %187 = sbr.rel (%p185) target = $region20
        $region19: #{tpu_custom_call.1} parent=11 // pred_region
          _
        $region20: #{tpu_custom_call.1} parent=11 // pred_fallthru
          _
        // Predicated region
        $region21: #{tpu_custom_call.1} parent=11 // pred_check
          %p188 = pneg %p120
        $region22: #{tpu_custom_call.1} parent=11 // pred_check_branch
          %190 = sbr.rel (%p188) target = $region24
        $region23: #{tpu_custom_call.1} parent=11 // pred_region
          _
        $region24: #{tpu_custom_call.1} parent=11 // pred_fallthru
          _
        // Predicated region
        $region25: #{tpu_custom_call.1} parent=11 // pred_check
          %p191 = pneg %p141
        $region26: #{tpu_custom_call.1} parent=11 // pred_check_branch
          %193 = sbr.rel (%p191) target = $region28
        $region27: #{tpu_custom_call.1} parent=11 // pred_region
          _
        $region28: #{tpu_custom_call.1} parent=11 // pred_fallthru
          _
      $region12: #{tpu_custom_call.1} parent=5 // pred_fallthru
        _
      %p194 = scmp.lt.s32.totalorder %s17, 2
      // Predicated region
      $region29: #{tpu_custom_call.1} parent=5 // pred_check
        %p195 = pneg %p194
      $region30: #{tpu_custom_call.1} parent=5 // pred_check_branch
        %197 = sbr.rel (%p195) target = $region32
      $region31: #{tpu_custom_call.1} parent=5 // pred_region
        // Predicated region
        $region33: #{tpu_custom_call.1} parent=31 // pred_check
          %p198 = pneg %p51
        $region34: #{tpu_custom_call.1} parent=31 // pred_check_branch
          %200 = sbr.rel (%p198) target = $region36
        $region35: #{tpu_custom_call.1} parent=31 // pred_region
          %s201 = sand.u32 %s41, 1
          %s202 = scalar_lea.sflag [#allocation4], %s201
          %s203 = sand.u32 %s41, 1
          %s204 = smul.addr %s203, 128
          %s205 = scalar_lea.vmem [#allocation3], %s204
          %s206 = smul.u32 16, %s24
          %s207 = smul.u32 2, %s25
          %s209 = ssub.s32 2048, 2048
          %210 = vsyncadd %s202, %s209
          %s211 = smul.addr %s206, 2
          %s212 = sadd.s32 %s207, %s211
          %s213 = smul.addr %s212, 64
          %s214 = scalar_lea.hbm %s0, %s213
          %s215 = sshll.u32 %s205, 4
          %s216 = int_to_ptr.vmem [resolvable:$true] %s215
          %221 = dma.hbm_to_vmem [thread:$0]  %s214, 2048, %s216, %s202, 128, 128, 8
        $region36: #{tpu_custom_call.1} parent=31 // pred_fallthru
          _
      $region32: #{tpu_custom_call.1} parent=5 // pred_fallthru
        _
      %p222 = scmp.le.s32.totalorder 1, %s17
      %p223 = scmp.lt.s32.totalorder %s17, 3
      %p224 = pnand %p222, %p223
      %p225 = pneg %p224
      // Predicated region
      $region37: #{tpu_custom_call.1} parent=5 // pred_check
        _
      $region38: #{tpu_custom_call.1} parent=5 // pred_check_branch
        %227 = sbr.rel (%p224) target = $region40
      $region39: #{tpu_custom_call.1} parent=5 // pred_region
        %s228 = ssub.s32 %s17, 1
        %s229 = sand.u32 %s44, 1
        %s230 = scalar_lea.sflag [#allocation4], %s229
        %s231 = sand.u32 %s44, 1
        %s232 = smul.addr %s231, 128
        %s233 = scalar_lea.vmem [#allocation3], %s232
        // Predicated region
        $region41: #{tpu_custom_call.1} parent=39 // pred_check
          %p234 = pneg %p57
        $region42: #{tpu_custom_call.1} parent=39 // pred_check_branch
          %236 = sbr.rel (%p234) target = $region44
        $region43: #{tpu_custom_call.1} parent=39 // pred_region
          %237 = dma.done %s230, 2048
        $region44: #{tpu_custom_call.1} parent=39 // pred_fallthru
          _
        %s238 = sand.u32 %s44, 1
        %s239 = scalar_lea.sflag [#allocation4], %s238
        %s240 = sand.u32 %s44, 1
        %s241 = smul.addr %s240, 128
        %s242 = scalar_lea.vmem [#allocation3], %s241
        %p243 = pneg %p57
        %p244 = pneg %p54
        %p245 = pneg %p78
        %p246 = pneg %p75
        %p247 = pneg %p99
        %p248 = pneg %p96
        %p249 = pneg %p120
        %p250 = pneg %p117
        %p251 = pneg %p141
        %p252 = pneg %p138
        %p253 = pneg %p167
        %p254 = pneg %p164
        %s255 = sand.u32 %s154, 1
        %s256 = scalar_lea.sflag [#allocation5], %s255
        %s257 = sand.u32 %s154, 1
        %s258 = smul.addr %s257, 128
        %s259 = scalar_lea.vmem [#allocation6], %s258
        %s260 = smul.u32 16, %s26
        %s261 = smul.u32 2, %s27
        %s262 = smul.u32 16, %s26
        %p264 = scmp.eq.s32.totalorder %s27, 0
        // Predicated region
        $region45: #{tpu_custom_call.1} parent=39 // pred_check
          %p265 = pneg %p264
        $region46: #{tpu_custom_call.1} parent=39 // pred_check_branch
          %267 = sbr.rel (%p265) target = $region48
        $region47: #{tpu_custom_call.1} parent=39 // pred_region
          %vm268 = vcmask 523264
          %269 = vst.msk [vmem:[#allocation2] sm:$0xff] %vm268, 0.0
          %270 = vst.msk [vmem:[#allocation2 + $0x8] sm:$0xff] %vm268, 0.0
          %271 = vst.msk [vmem:[#allocation2 + $0x10] sm:$0xff] %vm268, 0.0
          %272 = vst.msk [vmem:[#allocation2 + $0x18] sm:$0xff] %vm268, 0.0
          %273 = vst.msk [vmem:[#allocation2 + $0x20] sm:$0xff] %vm268, 0.0
          %274 = vst.msk [vmem:[#allocation2 + $0x28] sm:$0xff] %vm268, 0.0
          %275 = vst.msk [vmem:[#allocation2 + $0x30] sm:$0xff] %vm268, 0.0
          %276 = vst.msk [vmem:[#allocation2 + $0x38] sm:$0xff] %vm268, 0.0
          %277 = vst.msk [vmem:[#allocation2 + $0x40] sm:$0xff] %vm268, 0.0
          %278 = vst.msk [vmem:[#allocation2 + $0x48] sm:$0xff] %vm268, 0.0
          %279 = vst.msk [vmem:[#allocation2 + $0x50] sm:$0xff] %vm268, 0.0
          %280 = vst.msk [vmem:[#allocation2 + $0x58] sm:$0xff] %vm268, 0.0
          %281 = vst.msk [vmem:[#allocation2 + $0x60] sm:$0xff] %vm268, 0.0
          %282 = vst.msk [vmem:[#allocation2 + $0x68] sm:$0xff] %vm268, 0.0
          %283 = vst.msk [vmem:[#allocation2 + $0x70] sm:$0xff] %vm268, 0.0
          %284 = vst.msk [vmem:[#allocation2 + $0x78] sm:$0xff] %vm268, 0.0
        $region48: #{tpu_custom_call.1} parent=39 // pred_fallthru
          _
        %s285 = smul.u32 %s27, 256
        %s286 = sshra.s32 %s285, 3
        %s287 = sand.u32 %s285, 7
        %s288 = smul.addr %s286, 4
        %s289 = scalar_lea.vmem %s1, %s288
        %v290 = vld [vmem:[%s289] sm:$0xf]
        %v291 = vld [vmem:[%s289 + $0x4] sm:$0xf]
        %v292 = vld [vmem:[%s289 + $0x8] sm:$0xf]
        %v293 = vld [vmem:[%s289 + $0xc] sm:$0xf]
        %v294 = vld [vmem:[%s289 + $0x10] sm:$0xf]
        %v295 = vld [vmem:[%s289 + $0x14] sm:$0xf]
        %v296 = vld [vmem:[%s289 + $0x18] sm:$0xf]
        %v297 = vld [vmem:[%s289 + $0x1c] sm:$0xf]
        %v298 = vld [vmem:[%s289 + $0x20] sm:$0xf]
        %v299 = vld [vmem:[%s289 + $0x24] sm:$0xf]
        %v300 = vld [vmem:[%s289 + $0x28] sm:$0xf]
        %v301 = vld [vmem:[%s289 + $0x2c] sm:$0xf]
        %v302 = vld [vmem:[%s289 + $0x30] sm:$0xf]
        %v303 = vld [vmem:[%s289 + $0x34] sm:$0xf]
        %v304 = vld [vmem:[%s289 + $0x38] sm:$0xf]
        %v305 = vld [vmem:[%s289 + $0x3c] sm:$0xf]
        %v306 = vld [vmem:[%s289 + $0x40] sm:$0xf]
        %v307 = vld [vmem:[%s289 + $0x44] sm:$0xf]
        %v308 = vld [vmem:[%s289 + $0x48] sm:$0xf]
        %v309 = vld [vmem:[%s289 + $0x4c] sm:$0xf]
        %v310 = vld [vmem:[%s289 + $0x50] sm:$0xf]
        %v311 = vld [vmem:[%s289 + $0x54] sm:$0xf]
        %v312 = vld [vmem:[%s289 + $0x58] sm:$0xf]
        %v313 = vld [vmem:[%s289 + $0x5c] sm:$0xf]
        %v314 = vld [vmem:[%s289 + $0x60] sm:$0xf]
        %v315 = vld [vmem:[%s289 + $0x64] sm:$0xf]
        %v316 = vld [vmem:[%s289 + $0x68] sm:$0xf]
        %v317 = vld [vmem:[%s289 + $0x6c] sm:$0xf]
        %v318 = vld [vmem:[%s289 + $0x70] sm:$0xf]
        %v319 = vld [vmem:[%s289 + $0x74] sm:$0xf]
        %v320 = vld [vmem:[%s289 + $0x78] sm:$0xf]
        %v321 = vld [vmem:[%s289 + $0x7c] sm:$0xf]
        %v322 = vld [vmem:[#allocation2] sm:$0xff]
        %v323 = vld [vmem:[#allocation2 + $0x8] sm:$0xff]
        %v324 = vld [vmem:[#allocation2 + $0x10] sm:$0xff]
        %v325 = vld [vmem:[#allocation2 + $0x18] sm:$0xff]
        %v326 = vld [vmem:[#allocation2 + $0x20] sm:$0xff]
        %v327 = vld [vmem:[#allocation2 + $0x28] sm:$0xff]
        %v328 = vld [vmem:[#allocation2 + $0x30] sm:$0xff]
        %v329 = vld [vmem:[#allocation2 + $0x38] sm:$0xff]
        %v330 = vld [vmem:[#allocation2 + $0x40] sm:$0xff]
        %v331 = vld [vmem:[#allocation2 + $0x48] sm:$0xff]
        %v332 = vld [vmem:[#allocation2 + $0x50] sm:$0xff]
        %v333 = vld [vmem:[#allocation2 + $0x58] sm:$0xff]
        %v334 = vld [vmem:[#allocation2 + $0x60] sm:$0xff]
        %v335 = vld [vmem:[#allocation2 + $0x68] sm:$0xff]
        %v336 = vld [vmem:[#allocation2 + $0x70] sm:$0xff]
        %v337 = vld [vmem:[#allocation2 + $0x78] sm:$0xff]
        %v338 = vld [vmem:[%s233] sm:$0xff]
        %v339 = vld [vmem:[%s233 + $0x8] sm:$0xff]
        %v340 = vld [vmem:[%s233 + $0x10] sm:$0xff]
        %v341 = vld [vmem:[%s233 + $0x18] sm:$0xff]
        %v342 = vld [vmem:[%s233 + $0x20] sm:$0xff]
        %v343 = vld [vmem:[%s233 + $0x28] sm:$0xff]
        %v344 = vld [vmem:[%s233 + $0x30] sm:$0xff]
        %v345 = vld [vmem:[%s233 + $0x38] sm:$0xff]
        %v346 = vld [vmem:[%s233 + $0x40] sm:$0xff]
        %v347 = vld [vmem:[%s233 + $0x48] sm:$0xff]
        %v348 = vld [vmem:[%s233 + $0x50] sm:$0xff]
        %v349 = vld [vmem:[%s233 + $0x58] sm:$0xff]
        %v350 = vld [vmem:[%s233 + $0x60] sm:$0xff]
        %v351 = vld [vmem:[%s233 + $0x68] sm:$0xff]
        %v352 = vld [vmem:[%s233 + $0x70] sm:$0xff]
        %v353 = vld [vmem:[%s233 + $0x78] sm:$0xff]
        %v370 = vunpack.c.l.b16 %v338
        %v371 = vunpack.c.h.b16 %v338
        %v372 = vunpack.c.l.b16 %v339
        %v373 = vunpack.c.h.b16 %v339
        %v374 = vunpack.c.l.b16 %v340
        %v375 = vunpack.c.h.b16 %v340
        %v376 = vunpack.c.l.b16 %v341
        %v377 = vunpack.c.h.b16 %v341
        %v378 = vunpack.c.l.b16 %v342
        %v379 = vunpack.c.h.b16 %v342
        %v380 = vunpack.c.l.b16 %v343
        %v381 = vunpack.c.h.b16 %v343
        %v382 = vunpack.c.l.b16 %v344
        %v383 = vunpack.c.h.b16 %v344
        %v384 = vunpack.c.l.b16 %v345
        %v385 = vunpack.c.h.b16 %v345
        %v386 = vunpack.c.l.b16 %v346
        %v387 = vunpack.c.h.b16 %v346
        %v388 = vunpack.c.l.b16 %v347
        %v389 = vunpack.c.h.b16 %v347
        %v390 = vunpack.c.l.b16 %v348
        %v391 = vunpack.c.h.b16 %v348
        %v392 = vunpack.c.l.b16 %v349
        %v393 = vunpack.c.h.b16 %v349
        %v394 = vunpack.c.l.b16 %v350
        %v395 = vunpack.c.h.b16 %v350
        %v396 = vunpack.c.l.b16 %v351
        %v397 = vunpack.c.h.b16 %v351
        %v398 = vunpack.c.l.b16 %v352
        %v399 = vunpack.c.h.b16 %v352
        %v400 = vunpack.c.l.b16 %v353
        %v401 = vunpack.c.h.b16 %v353
        %v402 = vpack.c.b16 %v372, %v370
        %v403 = vpack.c.b16 %v373, %v371
        %v404 = vpack.c.b16 %v376, %v374
        %v405 = vpack.c.b16 %v377, %v375
        %v406 = vpack.c.b16 %v380, %v378
        %v407 = vpack.c.b16 %v381, %v379
        %v408 = vpack.c.b16 %v384, %v382
        %v409 = vpack.c.b16 %v385, %v383
        %v410 = vpack.c.b16 %v388, %v386
        %v411 = vpack.c.b16 %v389, %v387
        %v412 = vpack.c.b16 %v392, %v390
        %v413 = vpack.c.b16 %v393, %v391
        %v414 = vpack.c.b16 %v396, %v394
        %v415 = vpack.c.b16 %v397, %v395
        %v416 = vpack.c.b16 %v400, %v398
        %v417 = vpack.c.b16 %v401, %v399
        %v466 = vunpack.c.l.b16 %v290
        %v467 = vunpack.c.l.b16 %v291
        %v468 = vunpack.c.l.b16 %v292
        %v469 = vunpack.c.l.b16 %v293
        %v470 = vunpack.c.l.b16 %v294
        %v471 = vunpack.c.l.b16 %v295
        %v472 = vunpack.c.l.b16 %v296
        %v473 = vunpack.c.l.b16 %v297
        %v474 = vunpack.c.l.b16 %v298
        %v475 = vunpack.c.l.b16 %v299
        %v476 = vunpack.c.l.b16 %v300
        %v477 = vunpack.c.l.b16 %v301
        %v478 = vunpack.c.l.b16 %v302
        %v479 = vunpack.c.l.b16 %v303
        %v480 = vunpack.c.l.b16 %v304
        %v481 = vunpack.c.l.b16 %v305
        %v482 = vunpack.c.l.b16 %v306
        %v483 = vunpack.c.l.b16 %v307
        %v484 = vunpack.c.l.b16 %v308
        %v485 = vunpack.c.l.b16 %v309
        %v486 = vunpack.c.l.b16 %v310
        %v487 = vunpack.c.l.b16 %v311
        %v488 = vunpack.c.l.b16 %v312
        %v489 = vunpack.c.l.b16 %v313
        %v490 = vunpack.c.l.b16 %v314
        %v491 = vunpack.c.l.b16 %v315
        %v492 = vunpack.c.l.b16 %v316
        %v493 = vunpack.c.l.b16 %v317
        %v494 = vunpack.c.l.b16 %v318
        %v495 = vunpack.c.l.b16 %v319
        %v496 = vunpack.c.l.b16 %v320
        %v497 = vunpack.c.l.b16 %v321
        %v498 = vpack.c.b16 %v467, %v466
        %v499 = vpack.c.b16 %v469, %v468
        %v500 = vpack.c.b16 %v471, %v470
        %v501 = vpack.c.b16 %v473, %v472
        %v502 = vpack.c.b16 %v475, %v474
        %v503 = vpack.c.b16 %v477, %v476
        %v504 = vpack.c.b16 %v479, %v478
        %v505 = vpack.c.b16 %v481, %v480
        %v506 = vpack.c.b16 %v483, %v482
        %v507 = vpack.c.b16 %v485, %v484
        %v508 = vpack.c.b16 %v487, %v486
        %v509 = vpack.c.b16 %v489, %v488
        %v510 = vpack.c.b16 %v491, %v490
        %v511 = vpack.c.b16 %v493, %v492
        %v512 = vpack.c.b16 %v495, %v494
        %v513 = vpack.c.b16 %v497, %v496
        %530 = vmatprep.subr.bf16.mxu0 0
        %531 = vmatpush1.bf16.msra.mxu0 %v505
        %532 = vmatprep.subr.bf16.mxu0 0
        %533 = vmatpush1.bf16.msra.mxu0 %v504
        %534 = vmatprep.subr.bf16.mxu0 0
        %535 = vmatpush1.bf16.msra.mxu0 %v503
        %536 = vmatprep.subr.bf16.mxu0 0
        %537 = vmatpush1.bf16.msra.mxu0 %v502
        %538 = vmatprep.subr.bf16.mxu0 0
        %539 = vmatpush1.bf16.msra.mxu0 %v501
        %540 = vmatprep.subr.bf16.mxu0 0
        %541 = vmatpush1.bf16.msra.mxu0 %v500
        %542 = vmatprep.subr.bf16.mxu0 0
        %543 = vmatpush1.bf16.msra.mxu0 %v499
        %544 = vmatprep.subr.bf16.mxu0 0
        %545 = vmatpush1.bf16.msra.mxu0 %v498
        %546 = vmatprep.subr.bf16.mxu0 0
        %547 = vmatpush2.bf16.msra.mxu0 %v513
        %548 = vmatprep.subr.bf16.mxu0 0
        %549 = vmatpush2.bf16.msra.mxu0 %v512
        %550 = vmatprep.subr.bf16.mxu0 0
        %551 = vmatpush2.bf16.msra.mxu0 %v511
        %552 = vmatprep.subr.bf16.mxu0 0
        %553 = vmatpush2.bf16.msra.mxu0 %v510
        %554 = vmatprep.subr.bf16.mxu0 0
        %555 = vmatpush2.bf16.msra.mxu0 %v509
        %556 = vmatprep.subr.bf16.mxu0 0
        %557 = vmatpush2.bf16.msra.mxu0 %v508
        %558 = vmatprep.subr.bf16.mxu0 0
        %559 = vmatpush2.bf16.msra.mxu0 %v507
        %560 = vmatprep.subr.bf16.mxu0 0
        %561 = vmatpush2.bf16.msra.mxu0 %v506
        %562 = vmatprep.mubr.bf16.mxu0 %v403
        %563 = vmatmul.mubr.bf16.gmra.mxu0 %v402
        %v564 = vpop.f32.mrf.mxu0
        %v565 = vadd.f32 0.0, %v564
        %v566 = vpop.f32.mrf.mxu0
        %v567 = vpop.f32.mrf.mxu0
        %v568 = vadd.f32 0.0, %v567
        %v569 = vpop.f32.mrf.mxu0
        %570 = vmatprep.mubr.bf16.mxu0 %v405
        %571 = vmatmul.mubr.bf16.gmra.mxu0 %v404
        %v572 = vpop.f32.mrf.mxu0
        %v573 = vadd.f32 0.0, %v572
        %v574 = vpop.f32.mrf.mxu0
        %v575 = vpop.f32.mrf.mxu0
        %v576 = vadd.f32 0.0, %v575
        %v577 = vpop.f32.mrf.mxu0
        %578 = vmatprep.mubr.bf16.mxu0 %v407
        %579 = vmatmul.mubr.bf16.gmra.mxu0 %v406
        %v580 = vpop.f32.mrf.mxu0
        %v581 = vadd.f32 0.0, %v580
        %v582 = vpop.f32.mrf.mxu0
        %v583 = vpop.f32.mrf.mxu0
        %v584 = vadd.f32 0.0, %v583
        %v585 = vpop.f32.mrf.mxu0
        %586 = vmatprep.mubr.bf16.mxu0 %v409
        %587 = vmatmul.mubr.bf16.gmra.mxu0 %v408
        %v588 = vpop.f32.mrf.mxu0
        %v589 = vadd.f32 0.0, %v588
        %v590 = vpop.f32.mrf.mxu0
        %v591 = vpop.f32.mrf.mxu0
        %v592 = vadd.f32 0.0, %v591
        %v593 = vpop.f32.mrf.mxu0
        %594 = vmatprep.mubr.bf16.mxu0 %v411
        %595 = vmatmul.mubr.bf16.gmra.mxu0 %v410
        %v596 = vpop.f32.mrf.mxu0
        %v597 = vadd.f32 0.0, %v596
        %v598 = vpop.f32.mrf.mxu0
        %v599 = vpop.f32.mrf.mxu0
        %v600 = vadd.f32 0.0, %v599
        %v601 = vpop.f32.mrf.mxu0
        %602 = vmatprep.mubr.bf16.mxu0 %v413
        %603 = vmatmul.mubr.bf16.gmra.mxu0 %v412
        %v604 = vpop.f32.mrf.mxu0
        %v605 = vadd.f32 0.0, %v604
        %v606 = vpop.f32.mrf.mxu0
        %v607 = vpop.f32.mrf.mxu0
        %v608 = vadd.f32 0.0, %v607
        %v609 = vpop.f32.mrf.mxu0
        %610 = vmatprep.mubr.bf16.mxu0 %v415
        %611 = vmatmul.mubr.bf16.gmra.mxu0 %v414
        %v612 = vpop.f32.mrf.mxu0
        %v613 = vadd.f32 0.0, %v612
        %v614 = vpop.f32.mrf.mxu0
        %v615 = vpop.f32.mrf.mxu0
        %v616 = vadd.f32 0.0, %v615
        %v617 = vpop.f32.mrf.mxu0
        %618 = vmatprep.mubr.bf16.mxu0 %v417
        %619 = vmatmul.mubr.bf16.gmra.mxu0 %v416
        %v620 = vpop.f32.mrf.mxu0
        %v621 = vadd.f32 0.0, %v620
        %v622 = vpop.f32.mrf.mxu0
        %v623 = vpop.f32.mrf.mxu0
        %v624 = vadd.f32 0.0, %v623
        %v625 = vpop.f32.mrf.mxu0
        %626 = vdwg.mxu0
        %v627 = vadd.f32 %v322, %v565
        %v628 = vadd.f32 %v323, %v568
        %v629 = vadd.f32 %v324, %v573
        %v630 = vadd.f32 %v325, %v576
        %v631 = vadd.f32 %v326, %v581
        %v632 = vadd.f32 %v327, %v584
        %v633 = vadd.f32 %v328, %v589
        %v634 = vadd.f32 %v329, %v592
        %v635 = vadd.f32 %v330, %v597
        %v636 = vadd.f32 %v331, %v600
        %v637 = vadd.f32 %v332, %v605
        %v638 = vadd.f32 %v333, %v608
        %v639 = vadd.f32 %v334, %v613
        %v640 = vadd.f32 %v335, %v616
        %v641 = vadd.f32 %v336, %v621
        %v642 = vadd.f32 %v337, %v624
        %vm643 = vcmask 523264
        %644 = vst.msk [vmem:[#allocation2] sm:$0xff] %vm643, %v627
        %645 = vst.msk [vmem:[#allocation2 + $0x8] sm:$0xff] %vm643, %v628
        %646 = vst.msk [vmem:[#allocation2 + $0x10] sm:$0xff] %vm643, %v629
        %647 = vst.msk [vmem:[#allocation2 + $0x18] sm:$0xff] %vm643, %v630
        %648 = vst.msk [vmem:[#allocation2 + $0x20] sm:$0xff] %vm643, %v631
        %649 = vst.msk [vmem:[#allocation2 + $0x28] sm:$0xff] %vm643, %v632
        %650 = vst.msk [vmem:[#allocation2 + $0x30] sm:$0xff] %vm643, %v633
        %651 = vst.msk [vmem:[#allocation2 + $0x38] sm:$0xff] %vm643, %v634
        %652 = vst.msk [vmem:[#allocation2 + $0x40] sm:$0xff] %vm643, %v635
        %653 = vst.msk [vmem:[#allocation2 + $0x48] sm:$0xff] %vm643, %v636
        %654 = vst.msk [vmem:[#allocation2 + $0x50] sm:$0xff] %vm643, %v637
        %655 = vst.msk [vmem:[#allocation2 + $0x58] sm:$0xff] %vm643, %v638
        %656 = vst.msk [vmem:[#allocation2 + $0x60] sm:$0xff] %vm643, %v639
        %657 = vst.msk [vmem:[#allocation2 + $0x68] sm:$0xff] %vm643, %v640
        %658 = vst.msk [vmem:[#allocation2 + $0x70] sm:$0xff] %vm643, %v641
        %659 = vst.msk [vmem:[#allocation2 + $0x78] sm:$0xff] %vm643, %v642
        // Predicated region
        $region49: #{tpu_custom_call.1} parent=39 // pred_check
          %p660 = pneg %p264
        $region50: #{tpu_custom_call.1} parent=39 // pred_check_branch
          %662 = sbr.rel (%p660) target = $region52
        $region51: #{tpu_custom_call.1} parent=39 // pred_region
          %s663 = smul.u32 %s26, 128
          %s664 = sshra.s32 %s663, 3
          %s665 = sand.u32 %s663, 7
          %s666 = smul.addr %s664, 4
          %s667 = scalar_lea.vmem %s1, %s666
          %v668 = vld [vmem:[%s667] sm:$0xf]
          %v669 = vld [vmem:[%s667 + $0x4] sm:$0xf]
          %v670 = vld [vmem:[%s667 + $0x8] sm:$0xf]
          %v671 = vld [vmem:[%s667 + $0xc] sm:$0xf]
          %v672 = vld [vmem:[%s667 + $0x10] sm:$0xf]
          %v673 = vld [vmem:[%s667 + $0x14] sm:$0xf]
          %v674 = vld [vmem:[%s667 + $0x18] sm:$0xf]
          %v675 = vld [vmem:[%s667 + $0x1c] sm:$0xf]
          %v676 = vld [vmem:[%s667 + $0x20] sm:$0xf]
          %v677 = vld [vmem:[%s667 + $0x24] sm:$0xf]
          %v678 = vld [vmem:[%s667 + $0x28] sm:$0xf]
          %v679 = vld [vmem:[%s667 + $0x2c] sm:$0xf]
          %v680 = vld [vmem:[%s667 + $0x30] sm:$0xf]
          %v681 = vld [vmem:[%s667 + $0x34] sm:$0xf]
          %v682 = vld [vmem:[%s667 + $0x38] sm:$0xf]
          %v683 = vld [vmem:[%s667 + $0x3c] sm:$0xf]
          %v684 = vunpack.c.l.bf16 %v668
          %v685 = vunpack.c.l.bf16 %v669
          %v686 = vunpack.c.l.bf16 %v670
          %v687 = vunpack.c.l.bf16 %v671
          %v688 = vunpack.c.l.bf16 %v672
          %v689 = vunpack.c.l.bf16 %v673
          %v690 = vunpack.c.l.bf16 %v674
          %v691 = vunpack.c.l.bf16 %v675
          %v692 = vunpack.c.l.bf16 %v676
          %v693 = vunpack.c.l.bf16 %v677
          %v694 = vunpack.c.l.bf16 %v678
          %v695 = vunpack.c.l.bf16 %v679
          %v696 = vunpack.c.l.bf16 %v680
          %v697 = vunpack.c.l.bf16 %v681
          %v698 = vunpack.c.l.bf16 %v682
          %v699 = vunpack.c.l.bf16 %v683
          %v700 = vld [vmem:[%s2] sm:$0xff]
          %v701 = vld [vmem:[%s2 + $0x8] sm:$0xff]
          %v702 = vld [vmem:[%s2 + $0x10] sm:$0xff]
          %v703 = vld [vmem:[%s2 + $0x18] sm:$0xff]
          %v704 = vld [vmem:[%s2 + $0x20] sm:$0xff]
          %v705 = vld [vmem:[%s2 + $0x28] sm:$0xff]
          %v706 = vld [vmem:[%s2 + $0x30] sm:$0xff]
          %v707 = vld [vmem:[%s2 + $0x38] sm:$0xff]
          %v708 = vld [vmem:[#allocation2] sm:$0xff]
          %v709 = vld [vmem:[#allocation2 + $0x8] sm:$0xff]
          %v710 = vld [vmem:[#allocation2 + $0x10] sm:$0xff]
          %v711 = vld [vmem:[#allocation2 + $0x18] sm:$0xff]
          %v712 = vld [vmem:[#allocation2 + $0x20] sm:$0xff]
          %v713 = vld [vmem:[#allocation2 + $0x28] sm:$0xff]
          %v714 = vld [vmem:[#allocation2 + $0x30] sm:$0xff]
          %v715 = vld [vmem:[#allocation2 + $0x38] sm:$0xff]
          %v716 = vld [vmem:[#allocation2 + $0x40] sm:$0xff]
          %v717 = vld [vmem:[#allocation2 + $0x48] sm:$0xff]
          %v718 = vld [vmem:[#allocation2 + $0x50] sm:$0xff]
          %v719 = vld [vmem:[#allocation2 + $0x58] sm:$0xff]
          %v720 = vld [vmem:[#allocation2 + $0x60] sm:$0xff]
          %v721 = vld [vmem:[#allocation2 + $0x68] sm:$0xff]
          %v722 = vld [vmem:[#allocation2 + $0x70] sm:$0xff]
          %v723 = vld [vmem:[#allocation2 + $0x78] sm:$0xff]
          %v724 = vld [vmem:[%s3] sm:$0xff]
          %v725 = vld [vmem:[%s3 + $0x8] sm:$0xff]
          %v726 = vld [vmem:[%s3 + $0x10] sm:$0xff]
          %v727 = vld [vmem:[%s3 + $0x18] sm:$0xff]
          %v728 = vld [vmem:[%s3 + $0x20] sm:$0xff]
          %v729 = vld [vmem:[%s3 + $0x28] sm:$0xff]
          %v730 = vld [vmem:[%s3 + $0x30] sm:$0xff]
          %v731 = vld [vmem:[%s3 + $0x38] sm:$0xff]
          %v733 = vsel %vm643, %v708, 0
          %v736 = vsel %vm643, %v709, 0
          %v739 = vsel %vm643, %v710, 0
          %v742 = vsel %vm643, %v711, 0
          %v745 = vsel %vm643, %v712, 0
          %v748 = vsel %vm643, %v713, 0
          %v751 = vsel %vm643, %v714, 0
          %v754 = vsel %vm643, %v715, 0
          %v757 = vsel %vm643, %v716, 0
          %v760 = vsel %vm643, %v717, 0
          %v763 = vsel %vm643, %v718, 0
          %v766 = vsel %vm643, %v719, 0
          %v769 = vsel %vm643, %v720, 0
          %v772 = vsel %vm643, %v721, 0
          %v775 = vsel %vm643, %v722, 0
          %v778 = vsel %vm643, %v723, 0
          %780 = vmatprep.subr.mxu0 0.0
          %781 = vmatpush1.msra.mxu0 0.0
          %782 = vmatprep.subr.mxu0 0.0
          %783 = vmatpush1.msra.mxu0 0.0
          %784 = vmatprep.subr.mxu0 0.0
          %785 = vmatpush1.msra.mxu0 0.0
          %786 = vmatprep.subr.mxu0 0.0
          %787 = vmatpush1.msra.mxu0 0.0
          %788 = vmatprep.subr.mxu0 0.0
          %789 = vmatpush1.msra.mxu0 0.0
          %790 = vmatprep.subr.mxu0 0.0
          %791 = vmatpush1.msra.mxu0 0.0
          %792 = vmatprep.subr.mxu0 0.0
          %793 = vmatpush1.msra.mxu0 0.0
          %794 = vmatprep.subr.mxu0 0.0
          %795 = vmatpush1.msra.mxu0 0.0
          %796 = vmatprep.subr.mxu0 0.0
          %797 = vmatpush1.msra.mxu0 %v731
          %798 = vmatprep.subr.mxu0 0.0
          %799 = vmatpush1.msra.mxu0 %v730
          %800 = vmatprep.subr.mxu0 0.0
          %801 = vmatpush1.msra.mxu0 %v729
          %802 = vmatprep.subr.mxu0 0.0
          %803 = vmatpush1.msra.mxu0 %v728
          %804 = vmatprep.subr.mxu0 0.0
          %805 = vmatpush1.msra.mxu0 %v727
          %806 = vmatprep.subr.mxu0 0.0
          %807 = vmatpush1.msra.mxu0 %v726
          %808 = vmatprep.subr.mxu0 0.0
          %809 = vmatpush1.msra.mxu0 %v725
          %810 = vmatprep.subr.mxu0 0.0
          %811 = vmatpush1.msra.mxu0 %v724
          %812 = vmatprep.subr.mxu0 0.0
          %813 = vmatpush2.msra.mxu0 0.0
          %814 = vmatprep.subr.mxu0 0.0
          %815 = vmatpush2.msra.mxu0 0.0
          %816 = vmatprep.subr.mxu0 0.0
          %817 = vmatpush2.msra.mxu0 0.0
          %818 = vmatprep.subr.mxu0 0.0
          %819 = vmatpush2.msra.mxu0 0.0
          %820 = vmatprep.subr.mxu0 0.0
          %821 = vmatpush2.msra.mxu0 0.0
          %822 = vmatprep.subr.mxu0 0.0
          %823 = vmatpush2.msra.mxu0 0.0
          %824 = vmatprep.subr.mxu0 0.0
          %825 = vmatpush2.msra.mxu0 0.0
          %826 = vmatprep.subr.mxu0 0.0
          %827 = vmatpush2.msra.mxu0 0.0
          %828 = vmatprep.subr.mxu0 0.0
          %829 = vmatpush2.msra.mxu0 0.0
          %830 = vmatprep.subr.mxu0 0.0
          %831 = vmatpush2.msra.mxu0 0.0
          %832 = vmatprep.subr.mxu0 0.0
          %833 = vmatpush2.msra.mxu0 0.0
          %834 = vmatprep.subr.mxu0 0.0
          %835 = vmatpush2.msra.mxu0 0.0
          %836 = vmatprep.subr.mxu0 0.0
          %837 = vmatpush2.msra.mxu0 0.0
          %838 = vmatprep.subr.mxu0 0.0
          %839 = vmatpush2.msra.mxu0 0.0
          %840 = vmatprep.subr.mxu0 0.0
          %841 = vmatpush2.msra.mxu0 0.0
          %842 = vmatprep.subr.mxu0 0.0
          %843 = vmatpush2.msra.mxu0 0.0
          %844 = vmatprep.mubr.f32.mxu0 0.0
          %845 = vmatmul.mubr.f32.gmra.mxu0 %v733
          %v846 = vpop.f32.mrf.mxu0
          %v847 = vadd.f32 0.0, %v846
          %v848 = vpop.f32.mrf.mxu0
          %849 = vmatprep.mubr.f32.mxu0 0.0
          %850 = vmatmul.mubr.f32.gmra.mxu0 %v736
          %v851 = vpop.f32.mrf.mxu0
          %v852 = vadd.f32 0.0, %v851
          %v853 = vpop.f32.mrf.mxu0
          %854 = vmatprep.mubr.f32.mxu0 0.0
          %855 = vmatmul.mubr.f32.gmra.mxu0 %v739
          %v856 = vpop.f32.mrf.mxu0
          %v857 = vadd.f32 0.0, %v856
          %v858 = vpop.f32.mrf.mxu0
          %859 = vmatprep.mubr.f32.mxu0 0.0
          %860 = vmatmul.mubr.f32.gmra.mxu0 %v742
          %v861 = vpop.f32.mrf.mxu0
          %v862 = vadd.f32 0.0, %v861
          %v863 = vpop.f32.mrf.mxu0
          %864 = vmatprep.mubr.f32.mxu0 0.0
          %865 = vmatmul.mubr.f32.gmra.mxu0 %v745
          %v866 = vpop.f32.mrf.mxu0
          %v867 = vadd.f32 0.0, %v866
          %v868 = vpop.f32.mrf.mxu0
          %869 = vmatprep.mubr.f32.mxu0 0.0
          %870 = vmatmul.mubr.f32.gmra.mxu0 %v748
          %v871 = vpop.f32.mrf.mxu0
          %v872 = vadd.f32 0.0, %v871
          %v873 = vpop.f32.mrf.mxu0
          %874 = vmatprep.mubr.f32.mxu0 0.0
          %875 = vmatmul.mubr.f32.gmra.mxu0 %v751
          %v876 = vpop.f32.mrf.mxu0
          %v877 = vadd.f32 0.0, %v876
          %v878 = vpop.f32.mrf.mxu0
          %879 = vmatprep.mubr.f32.mxu0 0.0
          %880 = vmatmul.mubr.f32.gmra.mxu0 %v754
          %v881 = vpop.f32.mrf.mxu0
          %v882 = vadd.f32 0.0, %v881
          %v883 = vpop.f32.mrf.mxu0
          %884 = vmatprep.mubr.f32.mxu0 0.0
          %885 = vmatmul.mubr.f32.gmra.mxu0 %v757
          %v886 = vpop.f32.mrf.mxu0
          %v887 = vadd.f32 0.0, %v886
          %v888 = vpop.f32.mrf.mxu0
          %889 = vmatprep.mubr.f32.mxu0 0.0
          %890 = vmatmul.mubr.f32.gmra.mxu0 %v760
          %v891 = vpop.f32.mrf.mxu0
          %v892 = vadd.f32 0.0, %v891
          %v893 = vpop.f32.mrf.mxu0
          %894 = vmatprep.mubr.f32.mxu0 0.0
          %895 = vmatmul.mubr.f32.gmra.mxu0 %v763
          %v896 = vpop.f32.mrf.mxu0
          %v897 = vadd.f32 0.0, %v896
          %v898 = vpop.f32.mrf.mxu0
          %899 = vmatprep.mubr.f32.mxu0 0.0
          %900 = vmatmul.mubr.f32.gmra.mxu0 %v766
          %v901 = vpop.f32.mrf.mxu0
          %v902 = vadd.f32 0.0, %v901
          %v903 = vpop.f32.mrf.mxu0
          %904 = vmatprep.mubr.f32.mxu0 0.0
          %905 = vmatmul.mubr.f32.gmra.mxu0 %v769
          %v906 = vpop.f32.mrf.mxu0
          %v907 = vadd.f32 0.0, %v906
          %v908 = vpop.f32.mrf.mxu0
          %909 = vmatprep.mubr.f32.mxu0 0.0
          %910 = vmatmul.mubr.f32.gmra.mxu0 %v772
          %v911 = vpop.f32.mrf.mxu0
          %v912 = vadd.f32 0.0, %v911
          %v913 = vpop.f32.mrf.mxu0
          %914 = vmatprep.mubr.f32.mxu0 0.0
          %915 = vmatmul.mubr.f32.gmra.mxu0 %v775
          %v916 = vpop.f32.mrf.mxu0
          %v917 = vadd.f32 0.0, %v916
          %v918 = vpop.f32.mrf.mxu0
          %919 = vmatprep.mubr.f32.mxu0 0.0
          %920 = vmatmul.mubr.f32.gmra.mxu0 %v778
          %v921 = vpop.f32.mrf.mxu0
          %v922 = vadd.f32 0.0, %v921
          %v923 = vpop.f32.mrf.mxu0
          %924 = vdwg.mxu0
          %v926 = vsel %vm643, %v684, 0
          %v929 = vsel %vm643, %v685, 0
          %v932 = vsel %vm643, %v686, 0
          %v935 = vsel %vm643, %v687, 0
          %v938 = vsel %vm643, %v688, 0
          %v941 = vsel %vm643, %v689, 0
          %v944 = vsel %vm643, %v690, 0
          %v947 = vsel %vm643, %v691, 0
          %v950 = vsel %vm643, %v692, 0
          %v953 = vsel %vm643, %v693, 0
          %v956 = vsel %vm643, %v694, 0
          %v959 = vsel %vm643, %v695, 0
          %v962 = vsel %vm643, %v696, 0
          %v965 = vsel %vm643, %v697, 0
          %v968 = vsel %vm643, %v698, 0
          %v971 = vsel %vm643, %v699, 0
          %973 = vmatprep.subr.mxu0 0.0
          %974 = vmatpush1.msra.mxu0 0.0
          %975 = vmatprep.subr.mxu0 0.0
          %976 = vmatpush1.msra.mxu0 0.0
          %977 = vmatprep.subr.mxu0 0.0
          %978 = vmatpush1.msra.mxu0 0.0
          %979 = vmatprep.subr.mxu0 0.0
          %980 = vmatpush1.msra.mxu0 0.0
          %981 = vmatprep.subr.mxu0 0.0
          %982 = vmatpush1.msra.mxu0 0.0
          %983 = vmatprep.subr.mxu0 0.0
          %984 = vmatpush1.msra.mxu0 0.0
          %985 = vmatprep.subr.mxu0 0.0
          %986 = vmatpush1.msra.mxu0 0.0
          %987 = vmatprep.subr.mxu0 0.0
          %988 = vmatpush1.msra.mxu0 0.0
          %989 = vmatprep.subr.mxu0 0.0
          %990 = vmatpush1.msra.mxu0 %v707
          %991 = vmatprep.subr.mxu0 0.0
          %992 = vmatpush1.msra.mxu0 %v706
          %993 = vmatprep.subr.mxu0 0.0
          %994 = vmatpush1.msra.mxu0 %v705
          %995 = vmatprep.subr.mxu0 0.0
          %996 = vmatpush1.msra.mxu0 %v704
          %997 = vmatprep.subr.mxu0 0.0
          %998 = vmatpush1.msra.mxu0 %v703
          %999 = vmatprep.subr.mxu0 0.0
          %1000 = vmatpush1.msra.mxu0 %v702
          %1001 = vmatprep.subr.mxu0 0.0
          %1002 = vmatpush1.msra.mxu0 %v701
          %1003 = vmatprep.subr.mxu0 0.0
          %1004 = vmatpush1.msra.mxu0 %v700
          %1005 = vmatprep.subr.mxu0 0.0
          %1006 = vmatpush2.msra.mxu0 0.0
          %1007 = vmatprep.subr.mxu0 0.0
          %1008 = vmatpush2.msra.mxu0 0.0
          %1009 = vmatprep.subr.mxu0 0.0
          %1010 = vmatpush2.msra.mxu0 0.0
          %1011 = vmatprep.subr.mxu0 0.0
          %1012 = vmatpush2.msra.mxu0 0.0
          %1013 = vmatprep.subr.mxu0 0.0
          %1014 = vmatpush2.msra.mxu0 0.0
          %1015 = vmatprep.subr.mxu0 0.0
          %1016 = vmatpush2.msra.mxu0 0.0
          %1017 = vmatprep.subr.mxu0 0.0
          %1018 = vmatpush2.msra.mxu0 0.0
          %1019 = vmatprep.subr.mxu0 0.0
          %1020 = vmatpush2.msra.mxu0 0.0
          %1021 = vmatprep.subr.mxu0 0.0
          %1022 = vmatpush2.msra.mxu0 0.0
          %1023 = vmatprep.subr.mxu0 0.0
          %1024 = vmatpush2.msra.mxu0 0.0
          %1025 = vmatprep.subr.mxu0 0.0
          %1026 = vmatpush2.msra.mxu0 0.0
          %1027 = vmatprep.subr.mxu0 0.0
          %1028 = vmatpush2.msra.mxu0 0.0
          %1029 = vmatprep.subr.mxu0 0.0
          %1030 = vmatpush2.msra.mxu0 0.0
          %1031 = vmatprep.subr.mxu0 0.0
          %1032 = vmatpush2.msra.mxu0 0.0
          %1033 = vmatprep.subr.mxu0 0.0
          %1034 = vmatpush2.msra.mxu0 0.0
          %1035 = vmatprep.subr.mxu0 0.0
          %1036 = vmatpush2.msra.mxu0 0.0
          %1037 = vmatprep.mubr.f32.mxu0 0.0
          %1038 = vmatmul.mubr.f32.gmra.mxu0 %v926
          %v1039 = vpop.f32.mrf.mxu0
          %v1040 = vadd.f32 %v847, %v1039
          %v1041 = vpop.f32.mrf.mxu0
          %1042 = vmatprep.mubr.f32.mxu0 0.0
          %1043 = vmatmul.mubr.f32.gmra.mxu0 %v929
          %v1044 = vpop.f32.mrf.mxu0
          %v1045 = vadd.f32 %v852, %v1044
          %v1046 = vpop.f32.mrf.mxu0
          %1047 = vmatprep.mubr.f32.mxu0 0.0
          %1048 = vmatmul.mubr.f32.gmra.mxu0 %v932
          %v1049 = vpop.f32.mrf.mxu0
          %v1050 = vadd.f32 %v857, %v1049
          %v1051 = vpop.f32.mrf.mxu0
          %1052 = vmatprep.mubr.f32.mxu0 0.0
          %1053 = vmatmul.mubr.f32.gmra.mxu0 %v935
          %v1054 = vpop.f32.mrf.mxu0
          %v1055 = vadd.f32 %v862, %v1054
          %v1056 = vpop.f32.mrf.mxu0
          %1057 = vmatprep.mubr.f32.mxu0 0.0
          %1058 = vmatmul.mubr.f32.gmra.mxu0 %v938
          %v1059 = vpop.f32.mrf.mxu0
          %v1060 = vadd.f32 %v867, %v1059
          %v1061 = vpop.f32.mrf.mxu0
          %1062 = vmatprep.mubr.f32.mxu0 0.0
          %1063 = vmatmul.mubr.f32.gmra.mxu0 %v941
          %v1064 = vpop.f32.mrf.mxu0
          %v1065 = vadd.f32 %v872, %v1064
          %v1066 = vpop.f32.mrf.mxu0
          %1067 = vmatprep.mubr.f32.mxu0 0.0
          %1068 = vmatmul.mubr.f32.gmra.mxu0 %v944
          %v1069 = vpop.f32.mrf.mxu0
          %v1070 = vadd.f32 %v877, %v1069
          %v1071 = vpop.f32.mrf.mxu0
          %1072 = vmatprep.mubr.f32.mxu0 0.0
          %1073 = vmatmul.mubr.f32.gmra.mxu0 %v947
          %v1074 = vpop.f32.mrf.mxu0
          %v1075 = vadd.f32 %v882, %v1074
          %v1076 = vpop.f32.mrf.mxu0
          %1077 = vmatprep.mubr.f32.mxu0 0.0
          %1078 = vmatmul.mubr.f32.gmra.mxu0 %v950
          %v1079 = vpop.f32.mrf.mxu0
          %v1080 = vadd.f32 %v887, %v1079
          %v1081 = vpop.f32.mrf.mxu0
          %1082 = vmatprep.mubr.f32.mxu0 0.0
          %1083 = vmatmul.mubr.f32.gmra.mxu0 %v953
          %v1084 = vpop.f32.mrf.mxu0
          %v1085 = vadd.f32 %v892, %v1084
          %v1086 = vpop.f32.mrf.mxu0
          %1087 = vmatprep.mubr.f32.mxu0 0.0
          %1088 = vmatmul.mubr.f32.gmra.mxu0 %v956
          %v1089 = vpop.f32.mrf.mxu0
          %v1090 = vadd.f32 %v897, %v1089
          %v1091 = vpop.f32.mrf.mxu0
          %1092 = vmatprep.mubr.f32.mxu0 0.0
          %1093 = vmatmul.mubr.f32.gmra.mxu0 %v959
          %v1094 = vpop.f32.mrf.mxu0
          %v1095 = vadd.f32 %v902, %v1094
          %v1096 = vpop.f32.mrf.mxu0
          %1097 = vmatprep.mubr.f32.mxu0 0.0
          %1098 = vmatmul.mubr.f32.gmra.mxu0 %v962
          %v1099 = vpop.f32.mrf.mxu0
          %v1100 = vadd.f32 %v907, %v1099
          %v1101 = vpop.f32.mrf.mxu0
          %1102 = vmatprep.mubr.f32.mxu0 0.0
          %1103 = vmatmul.mubr.f32.gmra.mxu0 %v965
          %v1104 = vpop.f32.mrf.mxu0
          %v1105 = vadd.f32 %v912, %v1104
          %v1106 = vpop.f32.mrf.mxu0
          %1107 = vmatprep.mubr.f32.mxu0 0.0
          %1108 = vmatmul.mubr.f32.gmra.mxu0 %v968
          %v1109 = vpop.f32.mrf.mxu0
          %v1110 = vadd.f32 %v917, %v1109
          %v1111 = vpop.f32.mrf.mxu0
          %1112 = vmatprep.mubr.f32.mxu0 0.0
          %1113 = vmatmul.mubr.f32.gmra.mxu0 %v971
          %v1114 = vpop.f32.mrf.mxu0
          %v1115 = vadd.f32 %v922, %v1114
          %v1116 = vpop.f32.mrf.mxu0
          %1117 = vdwg.mxu0
          %v1118 = vld [vmem:[%s4] sm:$0x1]
          %v1120 = vlaneseq
          %v1121 = vshrl.u32 %v1120, 7
          %v1122 = vsub.s32 0, %v1121
          %v1123 = vrot.slane %v1118, %v1122
          %v1125 = vadd.f32 %v1040, %v1123
          %v1126 = vadd.f32 %v1045, %v1123
          %v1127 = vadd.f32 %v1050, %v1123
          %v1128 = vadd.f32 %v1055, %v1123
          %v1129 = vadd.f32 %v1060, %v1123
          %v1130 = vadd.f32 %v1065, %v1123
          %v1131 = vadd.f32 %v1070, %v1123
          %v1132 = vadd.f32 %v1075, %v1123
          %v1133 = vadd.f32 %v1080, %v1123
          %v1134 = vadd.f32 %v1085, %v1123
          %v1135 = vadd.f32 %v1090, %v1123
          %v1136 = vadd.f32 %v1095, %v1123
          %v1137 = vadd.f32 %v1100, %v1123
          %v1138 = vadd.f32 %v1105, %v1123
          %v1139 = vadd.f32 %v1110, %v1123
          %v1140 = vadd.f32 %v1115, %v1123
          %1141 = vst [vmem:[%s259] sm:$0xff] %v1125
          %1142 = vst [vmem:[%s259 + $0x8] sm:$0xff] %v1126
          %1143 = vst [vmem:[%s259 + $0x10] sm:$0xff] %v1127
          %1144 = vst [vmem:[%s259 + $0x18] sm:$0xff] %v1128
          %1145 = vst [vmem:[%s259 + $0x20] sm:$0xff] %v1129
          %1146 = vst [vmem:[%s259 + $0x28] sm:$0xff] %v1130
          %1147 = vst [vmem:[%s259 + $0x30] sm:$0xff] %v1131
          %1148 = vst [vmem:[%s259 + $0x38] sm:$0xff] %v1132
          %1149 = vst [vmem:[%s259 + $0x40] sm:$0xff] %v1133
          %1150 = vst [vmem:[%s259 + $0x48] sm:$0xff] %v1134
          %1151 = vst [vmem:[%s259 + $0x50] sm:$0xff] %v1135
          %1152 = vst [vmem:[%s259 + $0x58] sm:$0xff] %v1136
          %1153 = vst [vmem:[%s259 + $0x60] sm:$0xff] %v1137
          %1154 = vst [vmem:[%s259 + $0x68] sm:$0xff] %v1138
          %1155 = vst [vmem:[%s259 + $0x70] sm:$0xff] %v1139
          %1156 = vst [vmem:[%s259 + $0x78] sm:$0xff] %v1140
        $region52: #{tpu_custom_call.1} parent=39 // pred_fallthru
          _
        %s1157 = sand.u32 %s154, 1
        %s1158 = scalar_lea.sflag [#allocation5], %s1157
        %s1159 = sand.u32 %s154, 1
        %s1160 = smul.addr %s1159, 128
        %s1161 = scalar_lea.vmem [#allocation6], %s1160
        // Predicated region
        $region53: #{tpu_custom_call.1} parent=39 // pred_check
          %p1162 = pneg %p164
        $region54: #{tpu_custom_call.1} parent=39 // pred_check_branch
          %1164 = sbr.rel (%p1162) target = $region56
        $region55: #{tpu_custom_call.1} parent=39 // pred_region
          %s1165 = smul.u32 16, %s26
          %s1167 = ssub.s32 2048, 2048
          %1168 = vsyncadd %s1158, %s1167
          %s1169 = smul.addr %s1165, 128
          %s1170 = scalar_lea.hbm %s5, %s1169
          %s1171 = sshll.u32 %s1161, 4
          %s1172 = int_to_ptr.vmem [resolvable:$true] %s1171
          %1177 = dma.vmem_to_hbm [thread:$0]  %s1172, 2048, %s1170, %s1158, 128, 128, 8
        $region56: #{tpu_custom_call.1} parent=39 // pred_fallthru
          _
      $region40: #{tpu_custom_call.1} parent=5 // pred_fallthru
        _
      %p1178 = scmp.le.s32.totalorder 2, %s17
      // Predicated region
      $region57: #{tpu_custom_call.1} parent=5 // pred_check
        %p1179 = pneg %p1178
      $region58: #{tpu_custom_call.1} parent=5 // pred_check_branch
        %1181 = sbr.rel (%p1179) target = $region60
      $region59: #{tpu_custom_call.1} parent=5 // pred_region
        %s1182 = ssub.s32 %s17, 2
        // Predicated region
        $region61: #{tpu_custom_call.1} parent=59 // pred_check
          %p1183 = pneg %p170
        $region62: #{tpu_custom_call.1} parent=59 // pred_check_branch
          %1185 = sbr.rel (%p1183) target = $region64
        $region63: #{tpu_custom_call.1} parent=59 // pred_region
          %s1186 = sand.u32 %s155, 1
          %s1187 = scalar_lea.sflag [#allocation5], %s1186
          %s1188 = sand.u32 %s155, 1
          %s1189 = smul.addr %s1188, 128
          %s1190 = scalar_lea.vmem [#allocation6], %s1189
          %1191 = dma.done %s1187, 2048
        $region64: #{tpu_custom_call.1} parent=59 // pred_fallthru
          _
      $region60: #{tpu_custom_call.1} parent=5 // pred_fallthru
        _
    $region6: #{tpu_custom_call.1} parent=1 // loop_footer
      %s21 = sadd.s32 1, %s17
    $region7: #{tpu_custom_call.1} parent=1 // loop_footer_branch
      %16 = sbr.rel target = $region3
    $region8: #{tpu_custom_call.1} parent=1 // loop_exit
      _
    %1192 = vsyncpa [#allocation4], 1
    %s1193 = scalar_lea.sflag [#allocation4], 1
    %1194 = vsyncpa %s1193, 1
    %1195 = vsyncpa [#allocation5], 1
    %s1196 = scalar_lea.sflag [#allocation5], 1
    %1197 = vsyncpa %s1196, 1

</llo_original>
